<compile_context>
chip_gen: v7x
topology: tpu7x:2x2x1
jax: 0.10.0
libtpu: 0.0.40
codegen_flags: <defaults>
</compile_context>

<pallas_src>
import functools
import math

import jax
import jax.numpy as jnp
from jax import lax
from jax.experimental import pallas as pl
from jax.experimental.pallas import tpu as pltpu


_MASK_VALUE = -1e30                      # finite "-inf": avoids inf-inf NaNs in online softmax
_VMEM_LIMIT_BYTES = 48 * 1024 * 1024     # explicit scoped-VMEM limit, headroom below v7x's 64 MiB


def _round_up(x, m):
    return ((x + m - 1) // m) * m


def _choose_block(dim, target):
    """Block size + padded dim satisfying the (8,128)/full-dim BlockSpec rule."""
    if dim <= target:
        return dim, dim                      # full-dim block is always legal
    return target, _round_up(dim, target)    # target is a multiple of 128 (and 8)


# --------------------------- fused tiled projections ---------------------------

def _fused_linear_kernel(sec_ref, x_ref, w_ref, b_ref, o_ref, *, matmul_dtype):
    # x: (block_m, Ein); w: (Ein, Eout) pre-transposed -> no in-kernel .T; b: (1, Eout).
    # sec_ref (scalar prefetch) is only consumed by the index_maps.
    del sec_ref
    y = jnp.dot(x_ref[...].astype(matmul_dtype), w_ref[...].astype(matmul_dtype),
                preferred_element_type=jnp.float32)
    o_ref[...] = (y + b_ref[...].astype(jnp.float32)).astype(o_ref.dtype)


def pallas_fused_linear(xs, w_t, b, *, block_m=256, matmul_dtype=jnp.float32):
    """y_s = xs[s] @ w_t[s] + b[s] for every section s, in ONE pallas_call.

    xs:  list of 2-D inputs (rows_s, Ein), e.g. [query_rows, key_rows, value_rows].
    w_t: (S, Ein, Eout) pre-transposed weights (one slice per section).
    b:   (S, 1, Eout) biases.

    Rows are tiled by block_m (grid axis marked "parallel" -> megacore sharding);
    a scalar-prefetch section-id table routes each row block to its weight slice,
    so consecutive blocks of the same section reuse the resident weight block.
    """
    S, Ein, Eout = w_t.shape
    assert len(xs) == S
    dtype = xs[0].dtype
    rows = [int(x.shape[0]) for x in xs]
    bm = min(block_m, _round_up(max(rows), 8))
    padded = [_round_up(r, bm) for r in rows]
    xs_p = [x if p == r else jnp.pad(x, ((0, p - r), (0, 0)))
            for x, r, p in zip(xs, rows, padded)]
    x_all = xs_p[0] if S == 1 else jnp.concatenate(xs_p, axis=0)
    n_blocks = [p // bm for p in padded]
    sec_ids = jnp.concatenate(
        [jnp.full((n,), s, jnp.int32) for s, n in enumerate(n_blocks)])
    m_total = x_all.shape[0]

    kernel = functools.partial(_fused_linear_kernel, matmul_dtype=matmul_dtype)
    out = pl.pallas_call(
        kernel,
        out_shape=jax.ShapeDtypeStruct((m_total, Eout), dtype),
        grid_spec=pltpu.PrefetchScalarGridSpec(
            num_scalar_prefetch=1,
            grid=(m_total // bm,),
            in_specs=[
                pl.BlockSpec((bm, Ein), lambda i, sec: (i, 0)),
                pl.BlockSpec((None, Ein, Eout), lambda i, sec: (sec[i], 0, 0)),
                pl.BlockSpec((None, 1, Eout), lambda i, sec: (sec[i], 0, 0)),
            ],
            out_specs=pl.BlockSpec((bm, Eout), lambda i, sec: (i, 0)),
        ),
        compiler_params=pltpu.CompilerParams(
            dimension_semantics=("parallel",),
            vmem_limit_bytes=_VMEM_LIMIT_BYTES),
        cost_estimate=pl.CostEstimate(
            flops=2 * m_total * Ein * Eout,
            transcendentals=0,
            bytes_accessed=int(x_all.size * x_all.dtype.itemsize
                               + w_t.size * w_t.dtype.itemsize
                               + m_total * Eout * jnp.dtype(dtype).itemsize)),
    )(sec_ids, x_all, w_t, b)

    outs, off = [], 0
    for r, p in zip(rows, padded):
        outs.append(out[off:off + r])
        off += p
    return outs


# --------------------------- flash attention core ---------------------------

def _flash_attn_kernel(*refs, num_heads, head_dim, scale, causal,
                       block_q, block_k, matmul_dtype):
    if causal:
        q_ref, k_ref, v_ref, kvm_ref, o_ref, m_sc, l_sc, acc_sc = refs
        am_ref = None
    else:
        q_ref, k_ref, v_ref, kvm_ref, am_ref, o_ref, m_sc, l_sc, acc_sc = refs

    ki = pl.program_id(2)

    @pl.when(ki == 0)
    def _init():
        m_sc[...] = jnp.full_like(m_sc, _MASK_VALUE)
        l_sc[...] = jnp.zeros_like(l_sc)
        acc_sc[...] = jnp.zeros_like(acc_sc)

    q = q_ref[...].astype(jnp.float32) * scale      # (block_q, E)  (scale folded into q)
    k = k_ref[...]                                   # (block_k, E)
    v = v_ref[...]

    # Rebuild the mask in-kernel (VPU slack) instead of streaming a (B,Lq,Lk) f32 mask.
    allowed = kvm_ref[...] > 0                       # (1, block_k) key-padding mask
    if causal:
        row = pl.program_id(1) * block_q + lax.broadcasted_iota(
            jnp.int32, (block_q, block_k), 0)
        col = ki * block_k + lax.broadcasted_iota(
            jnp.int32, (block_q, block_k), 1)
        allowed = allowed & (row >= col)
    else:
        allowed = allowed & (am_ref[...] > 0)        # small (block_q, block_k) int32 tile

    for h in range(num_heads):                       # all heads processed per grid step
        sl = slice(h * head_dim, (h + 1) * head_dim)
        q_h = q[:, sl].astype(matmul_dtype)          # (block_q, Dh)
        k_h = k[:, sl].astype(matmul_dtype)          # (block_k, Dh)
        v_h = v[:, sl].astype(matmul_dtype)
        # Contract Dh of both operands directly -- no k.T relayout.
        s = lax.dot_general(q_h, k_h, (((1,), (1,)), ((), ())),
                            preferred_element_type=jnp.float32)   # (block_q, block_k)
        s = jnp.where(allowed, s, _MASK_VALUE)

        m_prev = m_sc[h]                             # (block_q, 1)
        m_new = jnp.maximum(m_prev, jnp.max(s, axis=-1, keepdims=True))
        alpha = jnp.exp(m_prev - m_new)
        p = jnp.exp(s - m_new)                       # f32 softmax math (v5e-safe)
        l_sc[h] = alpha * l_sc[h] + jnp.sum(p, axis=-1, keepdims=True)
        acc_sc[h] = alpha * acc_sc[h] + jnp.dot(
            p.astype(matmul_dtype), v_h, preferred_element_type=jnp.float32)
        m_sc[h] = m_new

    @pl.when(ki == pl.num_programs(2) - 1)
    def _finalize():
        pieces = []
        for h in range(num_heads):
            # 1/denom folded once per row at finalize; approx recip goes to the EUP slot.
            inv = pl.reciprocal(l_sc[h], approx=True)
            pieces.append(acc_sc[h] * inv)
        # single lane-dense (block_q, E) store straight into the (B, Lq, E) output
        o_ref[...] = jnp.concatenate(pieces, axis=-1).astype(o_ref.dtype)


def pallas_flash_attention(q, k, v, key_value_mask, attention_mask, *, num_heads,
                           causal=False, block_q=256, block_k=512,
                           matmul_dtype=jnp.float32):
    """softmax(q k^T / sqrt(Dh) + masks) v with online softmax, heads-packed (B, L, E) layout."""
    B, Lq, E = q.shape
    Lk = k.shape[1]
    Dh = E // num_heads

    bq, lq_p = _choose_block(Lq, block_q)
    bk, lk_p = _choose_block(Lk, block_k)

    if lq_p != Lq:
        q = jnp.pad(q, ((0, 0), (0, lq_p - Lq), (0, 0)))
    if lk_p != Lk:
        k = jnp.pad(k, ((0, 0), (0, lk_p - Lk), (0, 0)))
        v = jnp.pad(v, ((0, 0), (0, lk_p - Lk), (0, 0)))

    if key_value_mask is None:
        kvm = jnp.ones((B, 1, lk_p), jnp.int32)
    else:
        kvm = key_value_mask.astype(jnp.int32).reshape(B, 1, Lk)
        if lk_p != Lk:
            kvm = jnp.pad(kvm, ((0, 0), (0, 0), (0, lk_p - Lk)))   # padded keys masked out

    inputs = [q, k, v, kvm]
    in_specs = [
        pl.BlockSpec((None, bq, E), lambda b, qi, ki: (b, qi, 0)),
        pl.BlockSpec((None, bk, E), lambda b, qi, ki: (b, ki, 0)),
        pl.BlockSpec((None, bk, E), lambda b, qi, ki: (b, ki, 0)),
        pl.BlockSpec((None, 1, bk), lambda b, qi, ki: (b, 0, ki)),
    ]
    if not causal:
        if attention_mask is None:
            am = jnp.ones((lq_p, lk_p), jnp.int32)
        else:
            am = attention_mask.astype(jnp.int32)
            if (lq_p, lk_p) != (Lq, Lk):
                am = jnp.pad(am, ((0, lq_p - Lq), (0, lk_p - Lk)))
        inputs.append(am)
        in_specs.append(pl.BlockSpec((bq, bk), lambda b, qi, ki: (qi, ki)))

    kernel = functools.partial(
        _flash_attn_kernel, num_heads=num_heads, head_dim=Dh,
        scale=1.0 / math.sqrt(Dh), causal=causal,
        block_q=bq, block_k=bk, matmul_dtype=matmul_dtype)

    grid = (B, lq_p // bq, lk_p // bk)
    itemsize = jnp.dtype(q.dtype).itemsize
    out = pl.pallas_call(
        kernel,
        out_shape=jax.ShapeDtypeStruct((B, lq_p, E), q.dtype),
        grid=grid,
        in_specs=in_specs,
        out_specs=pl.BlockSpec((None, bq, E), lambda b, qi, ki: (b, qi, 0)),
        scratch_shapes=[
            pltpu.VMEM((num_heads, bq, 1), jnp.float32),    # running max
            pltpu.VMEM((num_heads, bq, 1), jnp.float32),    # running denominator
            pltpu.VMEM((num_heads, bq, Dh), jnp.float32),   # running output accumulator
        ],
        compiler_params=pltpu.CompilerParams(
            dimension_semantics=("parallel", "parallel", "arbitrary"),
            vmem_limit_bytes=_VMEM_LIMIT_BYTES),
        cost_estimate=pl.CostEstimate(
            flops=4 * B * num_heads * lq_p * lk_p * Dh,
            transcendentals=B * num_heads * lq_p * lk_p,
            bytes_accessed=int((q.size + k.size + v.size + B * lq_p * E) * itemsize)),
    )(*inputs)

    if lq_p != Lq:
        out = out[:, :Lq, :]
    return out


# ------------------------------ module forward ------------------------------

def multi_headed_attention(query, key, value, params, num_heads,
                           key_value_mask=None, attention_mask=None, *,
                           causal=False, matmul_dtype=jnp.float32,
                           block_m=256, block_q=256, block_k=512):
    """Forward pass equivalent to the PyTorch MultiHeadedAttention wrapper (eval mode).

    query: (B, Lq, E); key/value: (B, Lk, E)
    key_value_mask: (B, Lk) bool, True = valid token (torch key_padding_mask = ~mask)
    attention_mask: (Lq, Lk) bool, 0/False = disallowed position
    causal=True rebuilds a causal mask in-kernel from iotas (no mask DMA at all);
      use it when the mask is known to be lower-triangular.
    matmul_dtype=jnp.bfloat16 runs the MXU contractions in bf16 with f32
      accumulation (recommended on v6e/v7x); softmax math stays in f32.

    Note: query rows whose keys are all masked return finite values here (torch
    returns NaN for them).
    """
    B, Lq, E = query.shape
    Lk = key.shape[1]
    assert E % num_heads == 0

    in_w = params["in_proj_weight"]      # (3E, E) torch layout
    in_b = params["in_proj_bias"]        # (3E,)
    out_w = params["out_proj_weight"]    # (E, E)
    out_b = params["out_proj_bias"]      # (E,)
    w_dtype = matmul_dtype               # store projection weights at MXU precision

    # ---- fused QKV projection: ONE pallas_call covers all three projections ----
    if query is key and key is value:
        # self-attention: single (B*L, E) x (E, 3E) slab
        (qkv,) = pallas_fused_linear(
            [query.reshape(B * Lq, E)],
            in_w.T.reshape(1, E, 3 * E).astype(w_dtype),
            in_b.reshape(1, 1, 3 * E),
            block_m=block_m, matmul_dtype=matmul_dtype)
        q2d, k2d, v2d = qkv[:, :E], qkv[:, E:2 * E], qkv[:, 2 * E:]
    else:
        # cross-attention: row-concatenated q/k/v inputs, scalar-prefetch section
        # table routes each row block to its weight slice.
        w_t = jnp.stack([in_w[:E].T, in_w[E:2 * E].T, in_w[2 * E:].T]).astype(w_dtype)
        b3 = jnp.stack([in_b[:E], in_b[E:2 * E], in_b[2 * E:]]).reshape(3, 1, E)
        q2d, k2d, v2d = pallas_fused_linear(
            [query.reshape(B * Lq, E), key.reshape(B * Lk, E), value.reshape(B * Lk, E)],
            w_t, b3, block_m=block_m, matmul_dtype=matmul_dtype)

    # heads stay packed in the last dim -> reshapes only, NO transposes anywhere
    q = q2d.reshape(B, Lq, E)
    k = k2d.reshape(B, Lk, E)
    v = v2d.reshape(B, Lk, E)

    ctx = pallas_flash_attention(
        q, k, v, key_value_mask, None if causal else attention_mask,
        num_heads=num_heads, causal=causal, block_q=block_q, block_k=block_k,
        matmul_dtype=matmul_dtype)                       # (B, Lq, E)

    (out2d,) = pallas_fused_linear(
        [ctx.reshape(B * Lq, E)],
        out_w.T.reshape(1, E, E).astype(w_dtype),
        out_b.reshape(1, 1, E),
        block_m=block_m, matmul_dtype=matmul_dtype)
    return out2d.reshape(B, Lq, E)


# --------------------------------- reference --------------------------------

def _reference(query, key, value, params, num_heads, key_value_mask, attention_mask):
    B, Lq, E = query.shape
    Lk = key.shape[1]
    Dh = E // num_heads
    in_w, in_b = params["in_proj_weight"], params["in_proj_bias"]
    q = query @ in_w[:E].T + in_b[:E]
    k = key @ in_w[E:2 * E].T + in_b[E:2 * E]
    v = value @ in_w[2 * E:].T + in_b[2 * E:]
    q = q.reshape(B, Lq, num_heads, Dh).transpose(0, 2, 1, 3)
    k = k.reshape(B, Lk, num_heads, Dh).transpose(0, 2, 1, 3)
    v = v.reshape(B, Lk, num_heads, Dh).transpose(0, 2, 1, 3)
    s = jnp.einsum("bhqd,bhkd->bhqk", q, k) / math.sqrt(Dh)
    if attention_mask is not None:
        s = jnp.where(attention_mask[None, None], s, -jnp.inf)
    if key_value_mask is not None:
        s = jnp.where(key_value_mask[:, None, None, :], s, -jnp.inf)
    p = jax.nn.softmax(s, axis=-1)
    ctx = jnp.einsum("bhqk,bhkd->bhqd", p, v)
    ctx = ctx.transpose(0, 2, 1, 3).reshape(B, Lq, E)
    return ctx @ params["out_proj_weight"].T + params["out_proj_bias"]


# ----------------------------------- main -----------------------------------

if __name__ == "__main__":
    B, L, E, H = 2, 8, 32, 4

    root = jax.random.PRNGKey(0)
    kq, kk, kv, k1, k2, k3, k4 = jax.random.split(root, 7)

    query = jax.random.normal(kq, (B, L, E), jnp.float32)
    key = jax.random.normal(kk, (B, L, E), jnp.float32)
    value = jax.random.normal(kv, (B, L, E), jnp.float32)

    params = {
        "in_proj_weight": 0.05 * jax.random.normal(k1, (3 * E, E), jnp.float32),
        "in_proj_bias": 0.01 * jax.random.normal(k2, (3 * E,), jnp.float32),
        "out_proj_weight": 0.05 * jax.random.normal(k3, (E, E), jnp.float32),
        "out_proj_bias": 0.01 * jax.random.normal(k4, (E,), jnp.float32),
    }

    # key_value_mask: first 6 positions valid per batch element.
    key_value_mask = jnp.broadcast_to(jnp.arange(L)[None, :] < 6, (B, L))
    # attention_mask: causal (True/1 = allowed).
    attention_mask = jnp.tril(jnp.ones((L, L), dtype=bool))

    ref = _reference(query, key, value, params, H, key_value_mask, attention_mask)

    # 1) general path: explicit (Lq, Lk) attention mask DMA'd as small int32 tiles.
    out = multi_headed_attention(query, key, value, params, H,
                                 key_value_mask=key_value_mask,
                                 attention_mask=attention_mask)
    out = jax.block_until_ready(out)
    assert out.shape == (B, L, E)
    # tolerance covers the EUP approx-reciprocal used in the softmax finalize
    assert jnp.allclose(out, ref, atol=5e-3, rtol=5e-3), "general path mismatch"

    # 2) causal fast path: mask rebuilt in-kernel from iotas (no mask DMA at all).
    out_causal = multi_headed_attention(query, key, value, params, H,
                                        key_value_mask=key_value_mask,
                                        causal=True)
    out_causal = jax.block_until_ready(out_causal)
    assert jnp.allclose(out_causal, ref, atol=5e-3, rtol=5e-3), "causal path mismatch"

    # 3) bf16 MXU operands with f32 accumulation (v6e/v7x recipe).
    out_bf16 = multi_headed_attention(query, key, value, params, H,
                                      key_value_mask=key_value_mask,
                                      attention_mask=attention_mask,
                                      matmul_dtype=jnp.bfloat16)
    out_bf16 = jax.block_until_ready(out_bf16)
    assert jnp.allclose(out_bf16, ref, atol=5e-2, rtol=5e-2), "bf16 path mismatch"

    print("KERNEL_OK")
</pallas_src>

<mosaic_0001>
module attributes {stable_mosaic.version = 11 : i64} {
  func.func @_fused_linear_kernel(%arg0: i32, %arg1: memref<3xi32, #tpu.memory_space<smem>>, %arg2: memref<16x32xf32, #tpu.memory_space<vmem>>, %arg3: memref<1x32x32xf32, #tpu.memory_space<vmem>>, %arg4: memref<1x1x32xf32, #tpu.memory_space<vmem>>, %arg5: memref<16x32xf32, #tpu.memory_space<vmem>>) attributes {dimension_semantics = [#tpu.dimension_semantics<parallel>], iteration_bounds = array<i64: 3>, scalar_prefetch = 1 : i64, scratch_operands = 0 : i64, tpu.core_type = #tpu.core_type<tc>, window_params = [{transform_indices = @transform_0, window_bounds = array<i64: 16, 32>}, {transform_indices = @transform_1, window_bounds = array<i64: 1, 32, 32>}, {transform_indices = @transform_2, window_bounds = array<i64: 1, 1, 32>}, {transform_indices = @transform_3, window_bounds = array<i64: 16, 32>}]} {
    %c0 = arith.constant 0 : index
    %c0_0 = arith.constant 0 : index
    %0 = vector.load %arg2[%c0, %c0_0] : memref<16x32xf32, #tpu.memory_space<vmem>>, vector<16x32xf32>
    %c0_1 = arith.constant 0 : index
    %c0_2 = arith.constant 0 : index
    %c0_3 = arith.constant 0 : index
    %1 = vector.load %arg3[%c0_1, %c0_2, %c0_3] : memref<1x32x32xf32, #tpu.memory_space<vmem>>, vector<1x32x32xf32>
    %2 = vector.shape_cast %1 : vector<1x32x32xf32> to vector<32x32xf32>
    %cst = arith.constant dense<0.000000e+00> : vector<16x32xf32>
    %3 = tpu.matmul %0, %2, %cst {dimension_numbers = #tpu.dot_dimension_numbers<[1], [0], [0], [1], [0, 0, 1, 1], [], []>} : vector<16x32xf32>, vector<32x32xf32>, vector<16x32xf32> -> vector<16x32xf32>
    %c0_4 = arith.constant 0 : index
    %c0_5 = arith.constant 0 : index
    %c0_6 = arith.constant 0 : index
    %4 = vector.load %arg4[%c0_4, %c0_5, %c0_6] : memref<1x1x32xf32, #tpu.memory_space<vmem>>, vector<1x1x32xf32>
    %5 = vector.shape_cast %4 : vector<1x1x32xf32> to vector<1x32xf32>
    %6 = vector.broadcast %5 : vector<1x32xf32> to vector<16x32xf32>
    %7 = arith.addf %3, %6 : vector<16x32xf32>
    %c0_7 = arith.constant 0 : index
    %c0_8 = arith.constant 0 : index
    %8 = vector.load %arg5[%c0_7, %c0_8] : memref<16x32xf32, #tpu.memory_space<vmem>>, vector<16x32xf32>
    tpu.vector_store %arg5[%c0_7, %c0_8], %7 {strides = array<i32>} : memref<16x32xf32, #tpu.memory_space<vmem>>, vector<16x32xf32>,
    return
  }
  func.func @transform_0(%arg0: i32, %arg1: memref<3xi32, #tpu.memory_space<smem>>) -> (i32, i32) {
    %c0_i32 = arith.constant 0 : i32
    %c0_i32_0 = arith.constant 0 : i32
    return %arg0, %c0_i32 : i32, i32
  }
  func.func @transform_1(%arg0: i32, %arg1: memref<3xi32, #tpu.memory_space<smem>>) -> (i32, i32, i32) {
    %0 = arith.index_cast %arg0 : i32 to index
    %1 = memref.load %arg1[%0] : memref<3xi32, #tpu.memory_space<smem>>
    %c0_i32 = arith.constant 0 : i32
    %c0_i32_0 = arith.constant 0 : i32
    %c0_i32_1 = arith.constant 0 : i32
    return %1, %c0_i32, %c0_i32_0 : i32, i32, i32
  }
  func.func @transform_2(%arg0: i32, %arg1: memref<3xi32, #tpu.memory_space<smem>>) -> (i32, i32, i32) {
    %0 = arith.index_cast %arg0 : i32 to index
    %1 = memref.load %arg1[%0] : memref<3xi32, #tpu.memory_space<smem>>
    %c0_i32 = arith.constant 0 : i32
    %c0_i32_0 = arith.constant 0 : i32
    %c0_i32_1 = arith.constant 0 : i32
    return %1, %c0_i32, %c0_i32_0 : i32, i32, i32
  }
  func.func @transform_3(%arg0: i32, %arg1: memref<3xi32, #tpu.memory_space<smem>>) -> (i32, i32) {
    %c0_i32 = arith.constant 0 : i32
    %c0_i32_0 = arith.constant 0 : i32
    return %arg0, %c0_i32 : i32, i32
  }
}

</mosaic_0001>

<llo_original>
// kernel: tpu_custom_call.1
$region0: #{tpu_custom_call.1}
  #allocation0 [shape = 'u32[]', space=smem, size = 0x4, offset = 0x4, fixed_abs, tag = 'smem constant byte address 0x4 - core index']
  #allocation1 [shape = 'u32[144,128]{1,0:T(1,128)}', space=vmem, size = 0x12000, scoped, tag = 'internal scratch']
  #allocation2 [shape = 's32[1]{0}', space=sflag, size = 0x4, scoped, tag = 'scoped memory for tpu_custom_call.1']
  #allocation3 [shape = 'u8[512]{0}', space=smem, size = 0x200, scoped, tag = 'prefetched SMEM operand 0']
  %s0 = inlined_call_operand.vmem [shape: s32[3], index: 0, kind: input, shape index: {}]
  %s1 = inlined_call_operand.vmem [shape: f32[48,32], index: 1, kind: input, shape index: {}]
  %s2 = inlined_call_operand.hbm [shape: f32[3,32,32], index: 2, kind: input, shape index: {}]
  %s3 = inlined_call_operand.vmem [shape: f32[3,1,32], index: 3, kind: input, shape index: {}]
  %s4 = inlined_call_operand.vmem [shape: f32[48,32], index: 4, kind: output, shape index: {}]
  %s5 = sld [smem:[#allocation0]]
  $region49: #{tpu_custom_call.1} parent=0
    _
  %s7 = ssub.s32 1, %s5
  %s8 = scalar_select 0, %s7, %s5
  %s9 = sshll.u32 %s0, 4
  %s10 = int_to_ptr.vmem [resolvable:$true] %s9
  %12 = dma.vmem_to_smem %s10, 16, [#allocation3], [#allocation2]
  %13 = dma.done [#allocation2], 16
  %14 = sfence
  $region1: #{tpu_custom_call.1} parent=0
    #allocation4 [shape = 'u8[32768]{0}', space=vmem, size = 0x8000, scoped, tag = 'input window, operand 2']
    #allocation5 [shape = 's32[2]{0}', space=sflag, size = 0x8, scoped, tag = 'scoped memory for tpu_custom_call.1']
    %15 = vsyncpa [#allocation5], 0
    %s16 = scalar_lea.sflag [#allocation5], 1
    %17 = vsyncpa %s16, 0
    loop: start=0, step=1, limit=5
    $region2: #{tpu_custom_call.1} parent=1 // loop_pre_header
      _
    $region3: #{tpu_custom_call.1} parent=1 // loop_header
      %s19 = sphi 0, %s23
      %p20 = scmp.ge.s32.totalorder %s19, 5
      %s29 = sphi 0, %s31
      %s32 = sphi 0, %s29
      %s33 = sphi 0, %s32
      %s49 = sphi 0, %s33
      %s57 = sphi 0, %s59
      %s60 = sphi 0, %s57
      %s61 = sphi 0, %s60
      %s77 = sphi 0, %s61
      %s85 = sphi 0, %s87
      %s88 = sphi 0, %s85
      %s89 = sphi 0, %s88
      %s105 = sphi 0, %s89
      %s111 = sphi 0, %s113
      %s114 = sphi 0, %s111
      %s115 = sphi 0, %s114
      %s131 = sphi 0, %s115
    $region4: #{tpu_custom_call.1} parent=1 // loop_header_branch
      %22 = sbr.rel (%p20) target = $region8
    $region5: #{tpu_custom_call.1} parent=1 // loop_body
      %s24 = ssub.s32 %s19, 1
      %s25 = ssub.s32 %s19, 2
      %s26 = sadd.s32 %s19, 1
      %s27 = ssub.s32 %s19, %s26
      %p28 = scmp.eq.s32.totalorder %s27, 0
      %s30 = sadd.s32 %s29, 1
      %s31 = scalar_select %p28, %s29, %s30
      %p34 = pneg %p28
      %p35 = scmp.eq.s32.totalorder %s19, 2
      %p36 = por %p34, %p35
      %p37 = scmp.ne.s32.totalorder %s29, %s32
      %p38 = scmp.eq.s32.totalorder %s19, 0
      %p39 = por %p37, %p38
      %p40 = scmp.ne.s32.totalorder %s29, %s32
      %p41 = scmp.eq.s32.totalorder %s24, 2
      %p42 = por %p40, %p41
      %p43 = scmp.ne.s32.totalorder %s32, %s33
      %p44 = scmp.eq.s32.totalorder %s24, 0
      %p45 = por %p43, %p44
      %p46 = scmp.ne.s32.totalorder %s32, %s33
      %p47 = scmp.eq.s32.totalorder %s25, 2
      %p48 = por %p46, %p47
      %p50 = scmp.ne.s32.totalorder %s33, %s49
      %p51 = scmp.eq.s32.totalorder %s25, 0
      %p52 = por %p50, %p51
      %s53 = sld [smem:[#allocation3 + %s19]]
      %s54 = sld [smem:[#allocation3 + %s26]]
      %s55 = ssub.s32 %s53, %s54
      %p56 = scmp.eq.s32.totalorder %s55, 0
      %s58 = sadd.s32 %s57, 1
      %s59 = scalar_select %p56, %s57, %s58
      %p62 = pneg %p56
      %p63 = scmp.eq.s32.totalorder %s19, 2
      %p64 = por %p62, %p63
      %p65 = scmp.ne.s32.totalorder %s57, %s60
      %p66 = scmp.eq.s32.totalorder %s19, 0
      %p67 = por %p65, %p66
      %p68 = scmp.ne.s32.totalorder %s57, %s60
      %p69 = scmp.eq.s32.totalorder %s24, 2
      %p70 = por %p68, %p69
      %p71 = scmp.ne.s32.totalorder %s60, %s61
      %p72 = scmp.eq.s32.totalorder %s24, 0
      %p73 = por %p71, %p72
      %p74 = scmp.ne.s32.totalorder %s60, %s61
      %p75 = scmp.eq.s32.totalorder %s25, 2
      %p76 = por %p74, %p75
      %p78 = scmp.ne.s32.totalorder %s61, %s77
      %p79 = scmp.eq.s32.totalorder %s25, 0
      %p80 = por %p78, %p79
      %s81 = sld [smem:[#allocation3 + %s19]]
      %s82 = sld [smem:[#allocation3 + %s26]]
      %s83 = ssub.s32 %s81, %s82
      %p84 = scmp.eq.s32.totalorder %s83, 0
      %s86 = sadd.s32 %s85, 1
      %s87 = scalar_select %p84, %s85, %s86
      %p90 = pneg %p84
      %p91 = scmp.eq.s32.totalorder %s19, 2
      %p92 = por %p90, %p91
      %p93 = scmp.ne.s32.totalorder %s85, %s88
      %p94 = scmp.eq.s32.totalorder %s19, 0
      %p95 = por %p93, %p94
      %p96 = scmp.ne.s32.totalorder %s85, %s88
      %p97 = scmp.eq.s32.totalorder %s24, 2
      %p98 = por %p96, %p97
      %p99 = scmp.ne.s32.totalorder %s88, %s89
      %p100 = scmp.eq.s32.totalorder %s24, 0
      %p101 = por %p99, %p100
      %p102 = scmp.ne.s32.totalorder %s88, %s89
      %p103 = scmp.eq.s32.totalorder %s25, 2
      %p104 = por %p102, %p103
      %p106 = scmp.ne.s32.totalorder %s89, %s105
      %p107 = scmp.eq.s32.totalorder %s25, 0
      %p108 = por %p106, %p107
      %s109 = ssub.s32 %s19, %s26
      %p110 = scmp.eq.s32.totalorder %s109, 0
      %s112 = sadd.s32 %s111, 1
      %s113 = scalar_select %p110, %s111, %s112
      %p116 = pneg %p110
      %p117 = scmp.eq.s32.totalorder %s19, 2
      %p118 = por %p116, %p117
      %p119 = scmp.ne.s32.totalorder %s111, %s114
      %p120 = scmp.eq.s32.totalorder %s19, 0
      %p121 = por %p119, %p120
      %p122 = scmp.ne.s32.totalorder %s111, %s114
      %p123 = scmp.eq.s32.totalorder %s24, 2
      %p124 = por %p122, %p123
      %p125 = scmp.ne.s32.totalorder %s114, %s115
      %p126 = scmp.eq.s32.totalorder %s24, 0
      %p127 = por %p125, %p126
      %p128 = scmp.ne.s32.totalorder %s114, %s115
      %p129 = scmp.eq.s32.totalorder %s25, 2
      %p130 = por %p128, %p129
      %p132 = scmp.ne.s32.totalorder %s115, %s131
      %p133 = scmp.eq.s32.totalorder %s25, 0
      %p134 = por %p132, %p133
      %p135 = scmp.le.s32.totalorder 1, %s19
      %p136 = scmp.lt.s32.totalorder %s19, 4
      %p137 = pnand %p135, %p136
      %p138 = pneg %p137
      // Predicated region
      $region9: #{tpu_custom_call.1} parent=5 // pred_check
        _
      $region10: #{tpu_custom_call.1} parent=5 // pred_check_branch
        %140 = sbr.rel (%p137) target = $region12
      $region11: #{tpu_custom_call.1} parent=5 // pred_region
        %s141 = ssub.s32 %s19, 1
      $region12: #{tpu_custom_call.1} parent=5 // pred_fallthru
        _
      %p142 = scmp.lt.s32.totalorder %s19, 3
      // Predicated region
      $region13: #{tpu_custom_call.1} parent=5 // pred_check
        %p143 = pneg %p142
      $region14: #{tpu_custom_call.1} parent=5 // pred_check_branch
        %145 = sbr.rel (%p143) target = $region16
      $region15: #{tpu_custom_call.1} parent=5 // pred_region
        // Predicated region
        $region17: #{tpu_custom_call.1} parent=15 // pred_check
          %p146 = pneg %p39
        $region18: #{tpu_custom_call.1} parent=15 // pred_check_branch
          %148 = sbr.rel (%p146) target = $region20
        $region19: #{tpu_custom_call.1} parent=15 // pred_region
          %s149 = smul.u32 2, %s19
          %p150 = scmp.lt.s32.totalorder %s149, 5
          %s151 = scalar_select %p150, %s149, 5
          %s152 = smul.addr %s151, 8
          %s153 = scalar_lea.vmem %s1, %s152
          %s154 = smul.u32 2, %s19
        $region20: #{tpu_custom_call.1} parent=15 // pred_fallthru
          _
        // Predicated region
        $region21: #{tpu_custom_call.1} parent=15 // pred_check
          %p155 = pneg %p67
        $region22: #{tpu_custom_call.1} parent=15 // pred_check_branch
          %157 = sbr.rel (%p155) target = $region24
        $region23: #{tpu_custom_call.1} parent=15 // pred_region
          %s158 = sand.u32 %s57, 1
          %s159 = scalar_lea.sflag [#allocation5], %s158
          %s160 = sand.u32 %s57, 1
          %s161 = smul.addr %s160, 32
          %s162 = scalar_lea.vmem [#allocation4], %s161
          %s163 = sld [smem:[#allocation3 + %s19]]
          %s165 = ssub.s32 512, 512
          %166 = vsyncadd %s159, %s165
          %s167 = smul.addr %s163, 4
          %s168 = smul.addr %s167, 128
          %s169 = scalar_lea.hbm %s2, %s168
          %s170 = sshll.u32 %s162, 4
          %s171 = int_to_ptr.vmem [resolvable:$true] %s170
          %176 = dma.hbm_to_vmem [thread:$0]  %s169, 512, %s171, %s159, 128, 128, 8
        $region24: #{tpu_custom_call.1} parent=15 // pred_fallthru
          _
        // Predicated region
        $region25: #{tpu_custom_call.1} parent=15 // pred_check
          %p177 = pneg %p95
        $region26: #{tpu_custom_call.1} parent=15 // pred_check_branch
          %179 = sbr.rel (%p177) target = $region28
        $region27: #{tpu_custom_call.1} parent=15 // pred_region
          %s180 = sld [smem:[#allocation3 + %s19]]
          %p181 = scmp.lt.s32.totalorder %s180, 2
          %s182 = scalar_select %p181, %s180, 2
          %s183 = scalar_lea.vmem %s3, %s182
          %s184 = sld [smem:[#allocation3 + %s19]]
        $region28: #{tpu_custom_call.1} parent=15 // pred_fallthru
          _
      $region16: #{tpu_custom_call.1} parent=5 // pred_fallthru
        _
      %p185 = scmp.le.s32.totalorder 1, %s19
      %p186 = scmp.lt.s32.totalorder %s19, 4
      %p187 = pnand %p185, %p186
      %p188 = pneg %p187
      // Predicated region
      $region29: #{tpu_custom_call.1} parent=5 // pred_check
        _
      $region30: #{tpu_custom_call.1} parent=5 // pred_check_branch
        %190 = sbr.rel (%p187) target = $region32
      $region31: #{tpu_custom_call.1} parent=5 // pred_region
        %s191 = ssub.s32 %s19, 1
        %s192 = sand.u32 %s60, 1
        %s193 = scalar_lea.sflag [#allocation5], %s192
        %s194 = sand.u32 %s60, 1
        %s195 = smul.addr %s194, 32
        %s196 = scalar_lea.vmem [#allocation4], %s195
        // Predicated region
        $region33: #{tpu_custom_call.1} parent=31 // pred_check
          %p197 = pneg %p73
        $region34: #{tpu_custom_call.1} parent=31 // pred_check_branch
          %199 = sbr.rel (%p197) target = $region36
        $region35: #{tpu_custom_call.1} parent=31 // pred_region
          %200 = dma.done %s193, 512
        $region36: #{tpu_custom_call.1} parent=31 // pred_fallthru
          _
        %s201 = smul.u32 2, %s24
        %p202 = scmp.lt.s32.totalorder %s201, 5
        %s203 = scalar_select %p202, %s201, 5
        %s204 = smul.addr %s203, 8
        %s205 = scalar_lea.vmem %s1, %s204
        %p206 = pneg %p45
        %p207 = pneg %p42
        %s208 = sand.u32 %s60, 1
        %s209 = scalar_lea.sflag [#allocation5], %s208
        %s210 = sand.u32 %s60, 1
        %s211 = smul.addr %s210, 32
        %s212 = scalar_lea.vmem [#allocation4], %s211
        %p213 = pneg %p73
        %p214 = pneg %p70
        %s215 = sld [smem:[#allocation3 + %s24]]
        %p216 = scmp.lt.s32.totalorder %s215, 2
        %s217 = scalar_select %p216, %s215, 2
        %s218 = scalar_lea.vmem %s3, %s217
        %p219 = pneg %p101
        %p220 = pneg %p98
        %p221 = pneg %p127
        %p222 = pneg %p124
        %s223 = smul.u32 2, %s24
        %p224 = scmp.lt.s32.totalorder %s223, 5
        %s225 = scalar_select %p224, %s223, 5
        %s226 = smul.addr %s225, 8
        %s227 = scalar_lea.vmem %s4, %s226
        %s228 = smul.u32 2, %s24
        %p229 = scmp.lt.s32.totalorder %s228, 5
        %s230 = scalar_select %p229, %s228, 5
        %s231 = smul.addr %s230, 8
        %s232 = scalar_lea.vmem %s1, %s231
        %s233 = smul.u32 2, %s24
        %s234 = sld [smem:[#allocation3 + %s24]]
        %s235 = sld [smem:[#allocation3 + %s24]]
        %p236 = scmp.lt.s32.totalorder %s235, 2
        %s237 = scalar_select %p236, %s235, 2
        %s238 = scalar_lea.vmem %s3, %s237
        %s239 = sld [smem:[#allocation3 + %s24]]
        %s240 = smul.u32 2, %s24
        %p241 = scmp.lt.s32.totalorder %s240, 5
        %s242 = scalar_select %p241, %s240, 5
        %s243 = smul.addr %s242, 8
        %s244 = scalar_lea.vmem %s4, %s243
        %s245 = smul.u32 2, %s24
        %v246 = vld [vmem:[%s232] sm:$0xff]
        %v247 = vld [vmem:[%s232 + $0x8] sm:$0xff]
        %v248 = vld [vmem:[%s196] sm:$0xff]
        %v249 = vld [vmem:[%s196 + $0x8] sm:$0xff]
        %v250 = vld [vmem:[%s196 + $0x10] sm:$0xff]
        %v251 = vld [vmem:[%s196 + $0x18] sm:$0xff]
        %v252 = vld [vmem:[%s238] sm:$0x1]
        %v254 = vlaneseq
        %v255 = vshrl.u32 %v254, 7
        %v256 = vsub.s32 0, %v255
        %v257 = vrot.slane %v252, %v256
        %vm259 = vcmask 261120
        %v261 = vsel %vm259, %v246, 0
        %v264 = vsel %vm259, %v247, 0
        %266 = vmatprep.subr.mxu0 0.0
        %267 = vmatpush1.msra.mxu0 %v248
        %268 = vmatprep.subr.mxu0 0.0
        %269 = vmatpush1.msra.mxu0 %v249
        %270 = vmatprep.subr.mxu0 0.0
        %271 = vmatpush1.msra.mxu0 %v250
        %272 = vmatprep.subr.mxu0 0.0
        %273 = vmatpush1.msra.mxu0 %v251
        %274 = vmatprep.subr.mxu0 0.0
        %275 = vmatpush1.msra.mxu0 0.0
        %276 = vmatprep.subr.mxu0 0.0
        %277 = vmatpush1.msra.mxu0 0.0
        %278 = vmatprep.subr.mxu0 0.0
        %279 = vmatpush1.msra.mxu0 0.0
        %280 = vmatprep.subr.mxu0 0.0
        %281 = vmatpush1.msra.mxu0 0.0
        %282 = vmatprep.subr.mxu0 0.0
        %283 = vmatpush1.msra.mxu0 0.0
        %284 = vmatprep.subr.mxu0 0.0
        %285 = vmatpush1.msra.mxu0 0.0
        %286 = vmatprep.subr.mxu0 0.0
        %287 = vmatpush1.msra.mxu0 0.0
        %288 = vmatprep.subr.mxu0 0.0
        %289 = vmatpush1.msra.mxu0 0.0
        %290 = vmatprep.subr.mxu0 0.0
        %291 = vmatpush1.msra.mxu0 0.0
        %292 = vmatprep.subr.mxu0 0.0
        %293 = vmatpush1.msra.mxu0 0.0
        %294 = vmatprep.subr.mxu0 0.0
        %295 = vmatpush1.msra.mxu0 0.0
        %296 = vmatprep.subr.mxu0 0.0
        %297 = vmatpush1.msra.mxu0 0.0
        %298 = vmatprep.subr.mxu0 0.0
        %299 = vmatpush1.msra.mxu0 0.0
        %300 = vmatprep.subr.mxu0 0.0
        %301 = vmatpush1.msra.mxu0 0.0
        %302 = vmatprep.subr.mxu0 0.0
        %303 = vmatpush1.msra.mxu0 0.0
        %304 = vmatprep.subr.mxu0 0.0
        %305 = vmatpush1.msra.mxu0 0.0
        %306 = vmatprep.subr.mxu0 0.0
        %307 = vmatpush1.msra.mxu0 0.0
        %308 = vmatprep.subr.mxu0 0.0
        %309 = vmatpush1.msra.mxu0 0.0
        %310 = vmatprep.subr.mxu0 0.0
        %311 = vmatpush1.msra.mxu0 0.0
        %312 = vmatprep.subr.mxu0 0.0
        %313 = vmatpush1.msra.mxu0 0.0
        %314 = vmatprep.subr.mxu0 0.0
        %315 = vmatpush1.msra.mxu0 0.0
        %316 = vmatprep.subr.mxu0 0.0
        %317 = vmatpush1.msra.mxu0 0.0
        %318 = vmatprep.subr.mxu0 0.0
        %319 = vmatpush1.msra.mxu0 0.0
        %320 = vmatprep.subr.mxu0 0.0
        %321 = vmatpush1.msra.mxu0 0.0
        %322 = vmatprep.subr.mxu0 0.0
        %323 = vmatpush1.msra.mxu0 0.0
        %324 = vmatprep.subr.mxu0 0.0
        %325 = vmatpush1.msra.mxu0 0.0
        %326 = vmatprep.subr.mxu0 0.0
        %327 = vmatpush1.msra.mxu0 0.0
        %328 = vmatprep.subr.mxu0 0.0
        %329 = vmatpush1.msra.mxu0 0.0
        %330 = vmatprep.mubr.f32.mxu0 0.0
        %331 = vmatmul.mubr.f32.gmra.mrb[0].mxu0 %v261
        %v332 = vpop.f32.mrb[0].mxu0
        %v333 = vadd.f32 %v257, %v332
        %v334 = vpop.f32.mrb[0].mxu0
        %335 = vmatprep.mubr.f32.mxu0 0.0
        %336 = vmatmul.mubr.f32.gmra.mrb[0].mxu0 %v264
        %v337 = vpop.f32.mrb[0].mxu0
        %v338 = vadd.f32 %v257, %v337
        %v339 = vpop.f32.mrb[0].mxu0
        %340 = vdwg.mxu0
        %341 = vst.msk [vmem:[%s244] sm:$0xff] %vm259, %v333
        %342 = vst.msk [vmem:[%s244 + $0x8] sm:$0xff] %vm259, %v338
        %s343 = smul.u32 2, %s24
        %p344 = scmp.lt.s32.totalorder %s343, 5
        %s345 = scalar_select %p344, %s343, 5
        %s346 = smul.addr %s345, 8
        %s347 = scalar_lea.vmem %s4, %s346
        // Predicated region
        $region37: #{tpu_custom_call.1} parent=31 // pred_check
          %p348 = pneg %p124
        $region38: #{tpu_custom_call.1} parent=31 // pred_check_branch
          %350 = sbr.rel (%p348) target = $region40
        $region39: #{tpu_custom_call.1} parent=31 // pred_region
          %s351 = smul.u32 2, %s24
        $region40: #{tpu_custom_call.1} parent=31 // pred_fallthru
          _
      $region32: #{tpu_custom_call.1} parent=5 // pred_fallthru
        _
      %p352 = scmp.le.s32.totalorder 2, %s19
      // Predicated region
      $region41: #{tpu_custom_call.1} parent=5 // pred_check
        %p353 = pneg %p352
      $region42: #{tpu_custom_call.1} parent=5 // pred_check_branch
        %355 = sbr.rel (%p353) target = $region44
      $region43: #{tpu_custom_call.1} parent=5 // pred_region
        %s356 = ssub.s32 %s19, 2
        // Predicated region
        $region45: #{tpu_custom_call.1} parent=43 // pred_check
          %p357 = pneg %p130
        $region46: #{tpu_custom_call.1} parent=43 // pred_check_branch
          %359 = sbr.rel (%p357) target = $region48
        $region47: #{tpu_custom_call.1} parent=43 // pred_region
          %s360 = smul.u32 2, %s25
          %p361 = scmp.lt.s32.totalorder %s360, 5
          %s362 = scalar_select %p361, %s360, 5
          %s363 = smul.addr %s362, 8
          %s364 = scalar_lea.vmem %s4, %s363
        $region48: #{tpu_custom_call.1} parent=43 // pred_fallthru
          _
      $region44: #{tpu_custom_call.1} parent=5 // pred_fallthru
        _
    $region6: #{tpu_custom_call.1} parent=1 // loop_footer
      %s23 = sadd.s32 1, %s19
    $region7: #{tpu_custom_call.1} parent=1 // loop_footer_branch
      %18 = sbr.rel target = $region3
    $region8: #{tpu_custom_call.1} parent=1 // loop_exit
      _
    %365 = vsyncpa [#allocation5], 1
    %s366 = scalar_lea.sflag [#allocation5], 1
    %367 = vsyncpa %s366, 1

</llo_original>
